<compile_context>
chip_gen: v7x
topology: tpu7x:2x2x1
jax: 0.10.0
libtpu: 0.0.40
codegen_flags: <defaults>
</compile_context>

<pallas_src>
import jax
import jax.numpy as jnp
from jax.experimental import pallas as pl
from jax.experimental.pallas import tpu as pltpu


def _round_up(x, m):
    return (x + m - 1) // m * m


def _cdiv(a, b):
    return -(-a // b)


def _make_critic_kernel(n_actions, use_vpu_action):
    """Builds the kernel body (n_actions / branch are static at trace time)."""

    def kernel(s_ref, a_ref, w1s_ref, w1a_ref, b1_ref,
               w2_ref, b2_ref, w3_ref, b3_ref, q_ref):
        # ----- layer 1: concat fused into state-matmul + action update -------
        h1 = jnp.dot(s_ref[...].astype(jnp.bfloat16), w1s_ref[...],
                     preferred_element_type=jnp.float32)
        if use_vpu_action:
            # Rank-A update on the VPU (spare VALU slots). A K=A MXU pass would
            # cost as much as a full K=256 pass, so keep it off the MXU.
            a = a_ref[...]                      # (tb, A)  f32
            w1a = w1a_ref[...]                  # (A, H1)  f32
            for j in range(n_actions):
                h1 = h1 + a[:, j:j + 1] * w1a[j:j + 1, :]
        else:
            h1 = h1 + jnp.dot(a_ref[...].astype(jnp.bfloat16),
                              w1a_ref[...].astype(jnp.bfloat16),
                              preferred_element_type=jnp.float32)
        h1 = jnp.maximum(h1 + b1_ref[...], 0.0)         # ReLU (f32)

        # ----- layer 2: dominant MXU matmul, bf16 operands, f32 accum --------
        h2 = jnp.dot(h1.astype(jnp.bfloat16), w2_ref[...],
                     preferred_element_type=jnp.float32) + b2_ref[...]
        h2 = jnp.maximum(h2, 0.0)                        # ReLU (f32)

        # ----- layer 3: (1,H2) . (tb,H2)^T -> lane-dense (1, tb) row ---------
        q_row = jax.lax.dot_general(
            w3_ref[...], h2.astype(jnp.bfloat16),
            dimension_numbers=(((1,), (1,)), ((), ())),
            preferred_element_type=jnp.float32)
        q_row = q_row + b3_ref[0, 0]                     # scalar bias from SMEM
        q_ref[...] = q_row[None].astype(q_ref.dtype)     # (1, 1, tb)

    return kernel


def critic_forward(state, action, params, *, tile_b=512):
    """state: (B, S) f32, action: (B, A) f32 -> q: (B, 1) f32."""
    w1s, w1a, b1, w2, b2, w3_row, b3 = params
    B, S = state.shape
    A = action.shape[1]
    H1 = w1s.shape[1]
    H2 = w2.shape[1]

    # Batch tiling: balance tiles; guarantee >=2 grid steps whenever B > 8 so
    # the "parallel" batch axis can be split across v7x's two TensorCores.
    num_tiles = _cdiv(B, tile_b)
    if num_tiles == 1 and B > 8:
        num_tiles = 2
    tb = _round_up(_cdiv(B, num_tiles), 8)
    b_pad = num_tiles * tb
    if b_pad != B:
        pad = b_pad - B
        # Padded rows are computed and sliced off; they never alias real rows.
        state = jnp.pad(state, ((0, pad), (0, 0)))
        action = jnp.pad(action, ((0, pad), (0, 0)))

    kernel = _make_critic_kernel(A, use_vpu_action=(A <= 8))

    def batch_map(i):            # activation tiles move with the grid
        return (i, 0)

    def const_map(i):            # weights/biases stay resident in VMEM
        return (0, 0)

    q_rows = pl.pallas_call(
        kernel,
        out_shape=jax.ShapeDtypeStruct((num_tiles, 1, tb), jnp.float32),
        grid_spec=pltpu.PrefetchScalarGridSpec(
            num_scalar_prefetch=0,
            grid=(num_tiles,),
            in_specs=[
                pl.BlockSpec((tb, S), batch_map),       # state tile   (f32)
                pl.BlockSpec((tb, A), batch_map),       # action tile  (f32)
                pl.BlockSpec((S, H1), const_map),       # W1[:S]       (bf16)
                pl.BlockSpec((A, H1), const_map),       # W1[S:]       (f32)
                pl.BlockSpec((1, H1), const_map),       # b1           (f32)
                pl.BlockSpec((H1, H2), const_map),      # W2           (bf16)
                pl.BlockSpec((1, H2), const_map),       # b2           (f32)
                pl.BlockSpec((1, H2), const_map),       # W3 row       (bf16)
                pl.BlockSpec(memory_space=pltpu.MemorySpace.SMEM),  # b3 (1,1)
            ],
            out_specs=pl.BlockSpec((1, 1, tb), lambda i: (i, 0, 0)),
        ),
        compiler_params=pltpu.CompilerParams(
            # Batch tiles are independent -> megacore sharding on v7x.
            dimension_semantics=("parallel",),
        ),
    )(state, action, w1s, w1a, b1, w2, b2, w3_row, b3)

    return q_rows.reshape(b_pad, 1)[:B]


def init_critic_params(key, state_dim, n_actions, h1_dims, h2_dims):
    """PyTorch nn.Linear default init (f32): U(-1/sqrt(fan_in), 1/sqrt(fan_in)).

    Returns the f32 "master" weights in (in, out) layout (transpose of
    nn.Linear.weight).
    """
    k1, k2, k3 = jax.random.split(key, 3)

    def linear(k, fan_in, fan_out):
        kw, kb = jax.random.split(k)
        bound = 1.0 / jnp.sqrt(float(fan_in))
        w = jax.random.uniform(kw, (fan_in, fan_out), jnp.float32, -bound, bound)
        b = jax.random.uniform(kb, (1, fan_out), jnp.float32, -bound, bound)
        return w, b

    w1, b1 = linear(k1, state_dim + n_actions, h1_dims)
    w2, b2 = linear(k2, h1_dims, h2_dims)
    w3, b3 = linear(k3, h2_dims, 1)
    return (w1, b1, w2, b2, w3, b3)


def pack_critic_params(params_f32, state_dim):
    """Kernel layout: split W1 (concat fused), bf16 MXU operands, f32 biases."""
    w1, b1, w2, b2, w3, b3 = params_f32
    w1s = w1[:state_dim].astype(jnp.bfloat16)   # state rows -> MXU operand
    w1a = w1[state_dim:]                        # action rows -> VPU FMAs (f32)
    w3_row = w3.T.astype(jnp.bfloat16)          # (1, H2) q-layer weight row
    return (w1s, w1a, b1, w2.astype(jnp.bfloat16), b2, w3_row, b3)


if __name__ == "__main__":
    # Small shapes consistent with the module (hidden dims = module defaults).
    batch = 8
    input_dims = (16,)          # state dimension
    n_actions = 4
    h1_dims = 256
    h2_dims = 256

    key = jax.random.PRNGKey(0)
    k_state, k_action, k_params = jax.random.split(key, 3)

    state = jax.random.normal(k_state, (batch, input_dims[0]), jnp.float32)
    action = jax.random.normal(k_action, (batch, n_actions), jnp.float32)

    params_f32 = init_critic_params(k_params, input_dims[0], n_actions,
                                    h1_dims, h2_dims)
    kparams = pack_critic_params(params_f32, input_dims[0])

    q = critic_forward(state, action, kparams)
    q = jax.block_until_ready(q)

    # Plain-JAX f32 reference with the same math as the PyTorch forward
    # (explicit concat + three dense layers).
    w1, b1, w2, b2, w3, b3 = params_f32
    x = jnp.concatenate([state, action], axis=1)
    ref = jnp.maximum(x @ w1 + b1, 0.0)
    ref = jnp.maximum(ref @ w2 + b2, 0.0)
    ref = ref @ w3 + b3

    assert q.shape == (batch, 1)
    # bf16 MXU operands (f32 accumulation) -> loosened tolerance vs f32 ref.
    assert jnp.allclose(q, ref, atol=2e-2, rtol=2e-2), \
        float(jnp.max(jnp.abs(q - ref)))

    print("KERNEL_OK")
</pallas_src>

<mosaic_0001>
module attributes {stable_mosaic.version = 11 : i64} {
  func.func @kernel(%arg0: i32, %arg1: memref<8x16xf32, #tpu.memory_space<vmem>>, %arg2: memref<8x4xf32, #tpu.memory_space<vmem>>, %arg3: memref<16x256xbf16, #tpu.memory_space<vmem>>, %arg4: memref<4x256xf32, #tpu.memory_space<vmem>>, %arg5: memref<1x256xf32, #tpu.memory_space<vmem>>, %arg6: memref<256x256xbf16, #tpu.memory_space<vmem>>, %arg7: memref<1x256xf32, #tpu.memory_space<vmem>>, %arg8: memref<1x256xbf16, #tpu.memory_space<vmem>>, %arg9: memref<1x1xf32, #tpu.memory_space<smem>>, %arg10: memref<1x1x8xf32, #tpu.memory_space<vmem>>) attributes {dimension_semantics = [#tpu.dimension_semantics<parallel>], iteration_bounds = array<i64: 1>, scalar_prefetch = 0 : i64, scratch_operands = 0 : i64, tpu.core_type = #tpu.core_type<tc>, window_params = [{transform_indices = @transform_0, window_bounds = array<i64: 8, 16>}, {transform_indices = @transform_1, window_bounds = array<i64: 8, 4>}, {pipeline_mode = #tpu.pipeline_mode<synchronous>, transform_indices = @transform_2, window_bounds = array<i64: 16, 256>}, {pipeline_mode = #tpu.pipeline_mode<synchronous>, transform_indices = @transform_3, window_bounds = array<i64: 4, 256>}, {pipeline_mode = #tpu.pipeline_mode<synchronous>, transform_indices = @transform_4, window_bounds = array<i64: 1, 256>}, {pipeline_mode = #tpu.pipeline_mode<synchronous>, transform_indices = @transform_5, window_bounds = array<i64: 256, 256>}, {pipeline_mode = #tpu.pipeline_mode<synchronous>, transform_indices = @transform_6, window_bounds = array<i64: 1, 256>}, {pipeline_mode = #tpu.pipeline_mode<synchronous>, transform_indices = @transform_7, window_bounds = array<i64: 1, 256>}, {transform_indices = @transform_8, window_bounds = array<i64: 1, 1>}, {transform_indices = @transform_9, window_bounds = array<i64: 1, 1, 8>}]} {
    %c0 = arith.constant 0 : index
    %c0_0 = arith.constant 0 : index
    %0 = vector.load %arg1[%c0, %c0_0] : memref<8x16xf32, #tpu.memory_space<vmem>>, vector<8x16xf32>
    %1 = arith.truncf %0 : vector<8x16xf32> to vector<8x16xbf16>
    %c0_1 = arith.constant 0 : index
    %c0_2 = arith.constant 0 : index
    %2 = vector.load %arg3[%c0_1, %c0_2] : memref<16x256xbf16, #tpu.memory_space<vmem>>, vector<16x256xbf16>
    %cst = arith.constant dense<0.000000e+00> : vector<8x256xf32>
    %3 = tpu.matmul %1, %2, %cst {dimension_numbers = #tpu.dot_dimension_numbers<[1], [0], [0], [1], [0, 0, 1, 1], [], []>} : vector<8x16xbf16>, vector<16x256xbf16>, vector<8x256xf32> -> vector<8x256xf32>
    %c0_3 = arith.constant 0 : index
    %c0_4 = arith.constant 0 : index
    %4 = vector.load %arg2[%c0_3, %c0_4] : memref<8x4xf32, #tpu.memory_space<vmem>>, vector<8x4xf32>
    %c0_5 = arith.constant 0 : index
    %c0_6 = arith.constant 0 : index
    %5 = vector.load %arg4[%c0_5, %c0_6] : memref<4x256xf32, #tpu.memory_space<vmem>>, vector<4x256xf32>
    %6 = vector.extract_strided_slice %4 {offsets = [0, 0], sizes = [8, 1], strides = [1, 1]} : vector<8x4xf32> to vector<8x1xf32>
    %7 = vector.extract_strided_slice %5 {offsets = [0, 0], sizes = [1, 256], strides = [1, 1]} : vector<4x256xf32> to vector<1x256xf32>
    %8 = vector.broadcast %6 : vector<8x1xf32> to vector<8x256xf32>
    %9 = vector.broadcast %7 : vector<1x256xf32> to vector<8x256xf32>
    %10 = arith.mulf %8, %9 : vector<8x256xf32>
    %11 = arith.addf %3, %10 : vector<8x256xf32>
    %12 = vector.extract_strided_slice %4 {offsets = [0, 1], sizes = [8, 1], strides = [1, 1]} : vector<8x4xf32> to vector<8x1xf32>
    %13 = vector.extract_strided_slice %5 {offsets = [1, 0], sizes = [1, 256], strides = [1, 1]} : vector<4x256xf32> to vector<1x256xf32>
    %14 = vector.broadcast %12 : vector<8x1xf32> to vector<8x256xf32>
    %15 = vector.broadcast %13 : vector<1x256xf32> to vector<8x256xf32>
    %16 = arith.mulf %14, %15 : vector<8x256xf32>
    %17 = arith.addf %11, %16 : vector<8x256xf32>
    %18 = vector.extract_strided_slice %4 {offsets = [0, 2], sizes = [8, 1], strides = [1, 1]} : vector<8x4xf32> to vector<8x1xf32>
    %19 = vector.extract_strided_slice %5 {offsets = [2, 0], sizes = [1, 256], strides = [1, 1]} : vector<4x256xf32> to vector<1x256xf32>
    %20 = vector.broadcast %18 : vector<8x1xf32> to vector<8x256xf32>
    %21 = vector.broadcast %19 : vector<1x256xf32> to vector<8x256xf32>
    %22 = arith.mulf %20, %21 : vector<8x256xf32>
    %23 = arith.addf %17, %22 : vector<8x256xf32>
    %24 = vector.extract_strided_slice %4 {offsets = [0, 3], sizes = [8, 1], strides = [1, 1]} : vector<8x4xf32> to vector<8x1xf32>
    %25 = vector.extract_strided_slice %5 {offsets = [3, 0], sizes = [1, 256], strides = [1, 1]} : vector<4x256xf32> to vector<1x256xf32>
    %26 = vector.broadcast %24 : vector<8x1xf32> to vector<8x256xf32>
    %27 = vector.broadcast %25 : vector<1x256xf32> to vector<8x256xf32>
    %28 = arith.mulf %26, %27 : vector<8x256xf32>
    %29 = arith.addf %23, %28 : vector<8x256xf32>
    %c0_7 = arith.constant 0 : index
    %c0_8 = arith.constant 0 : index
    %30 = vector.load %arg5[%c0_7, %c0_8] : memref<1x256xf32, #tpu.memory_space<vmem>>, vector<1x256xf32>
    %31 = vector.broadcast %30 : vector<1x256xf32> to vector<8x256xf32>
    %32 = arith.addf %29, %31 : vector<8x256xf32>
    %cst_9 = arith.constant 0.000000e+00 : f32
    %33 = vector.broadcast %cst_9 : f32 to vector<8x256xf32>
    %34 = arith.maximumf %32, %33 : vector<8x256xf32>
    %35 = arith.truncf %34 : vector<8x256xf32> to vector<8x256xbf16>
    %c0_10 = arith.constant 0 : index
    %c0_11 = arith.constant 0 : index
    %36 = vector.load %arg6[%c0_10, %c0_11] : memref<256x256xbf16, #tpu.memory_space<vmem>>, vector<256x256xbf16>
    %cst_12 = arith.constant dense<0.000000e+00> : vector<8x256xf32>
    %37 = tpu.matmul %35, %36, %cst_12 {dimension_numbers = #tpu.dot_dimension_numbers<[1], [0], [0], [1], [0, 0, 1, 1], [], []>} : vector<8x256xbf16>, vector<256x256xbf16>, vector<8x256xf32> -> vector<8x256xf32>
    %c0_13 = arith.constant 0 : index
    %c0_14 = arith.constant 0 : index
    %38 = vector.load %arg7[%c0_13, %c0_14] : memref<1x256xf32, #tpu.memory_space<vmem>>, vector<1x256xf32>
    %39 = vector.broadcast %38 : vector<1x256xf32> to vector<8x256xf32>
    %40 = arith.addf %37, %39 : vector<8x256xf32>
    %cst_15 = arith.constant 0.000000e+00 : f32
    %41 = vector.broadcast %cst_15 : f32 to vector<8x256xf32>
    %42 = arith.maximumf %40, %41 : vector<8x256xf32>
    %c0_16 = arith.constant 0 : index
    %c0_17 = arith.constant 0 : index
    %43 = vector.load %arg8[%c0_16, %c0_17] : memref<1x256xbf16, #tpu.memory_space<vmem>>, vector<1x256xbf16>
    %44 = arith.truncf %42 : vector<8x256xf32> to vector<8x256xbf16>
    %cst_18 = arith.constant dense<0.000000e+00> : vector<1x8xf32>
    %45 = tpu.matmul %43, %44, %cst_18 {dimension_numbers = #tpu.dot_dimension_numbers<[1], [1], [0], [0], [0, 0, 1, 0], [], []>} : vector<1x256xbf16>, vector<8x256xbf16>, vector<1x8xf32> -> vector<1x8xf32>
    %c0_19 = arith.constant 0 : index
    %c0_20 = arith.constant 0 : index
    %46 = memref.load %arg9[%c0_19, %c0_20] : memref<1x1xf32, #tpu.memory_space<smem>>
    %47 = vector.broadcast %46 : f32 to vector<1x8xf32>
    %48 = arith.addf %45, %47 : vector<1x8xf32>
    %49 = vector.shape_cast %48 : vector<1x8xf32> to vector<1x1x8xf32>
    %c0_21 = arith.constant 0 : index
    %c0_22 = arith.constant 0 : index
    %c0_23 = arith.constant 0 : index
    %50 = vector.load %arg10[%c0_21, %c0_22, %c0_23] : memref<1x1x8xf32, #tpu.memory_space<vmem>>, vector<1x1x8xf32>
    tpu.vector_store %arg10[%c0_21, %c0_22, %c0_23], %49 {strides = array<i32>} : memref<1x1x8xf32, #tpu.memory_space<vmem>>, vector<1x1x8xf32>,
    return
  }
  func.func @transform_0(%arg0: i32) -> (i32, i32) {
    %c0_i32 = arith.constant 0 : i32
    %c0_i32_0 = arith.constant 0 : i32
    return %arg0, %c0_i32 : i32, i32
  }
  func.func @transform_1(%arg0: i32) -> (i32, i32) {
    %c0_i32 = arith.constant 0 : i32
    %c0_i32_0 = arith.constant 0 : i32
    return %arg0, %c0_i32 : i32, i32
  }
  func.func @transform_2(%arg0: i32) -> (i32, i32) {
    %c0_i32 = arith.constant 0 : i32
    %c0_i32_0 = arith.constant 0 : i32
    %c0_i32_1 = arith.constant 0 : i32
    return %c0_i32, %c0_i32_0 : i32, i32
  }
  func.func @transform_3(%arg0: i32) -> (i32, i32) {
    %c0_i32 = arith.constant 0 : i32
    %c0_i32_0 = arith.constant 0 : i32
    %c0_i32_1 = arith.constant 0 : i32
    return %c0_i32, %c0_i32_0 : i32, i32
  }
  func.func @transform_4(%arg0: i32) -> (i32, i32) {
    %c0_i32 = arith.constant 0 : i32
    %c0_i32_0 = arith.constant 0 : i32
    %c0_i32_1 = arith.constant 0 : i32
    return %c0_i32, %c0_i32_0 : i32, i32
  }
  func.func @transform_5(%arg0: i32) -> (i32, i32) {
    %c0_i32 = arith.constant 0 : i32
    %c0_i32_0 = arith.constant 0 : i32
    %c0_i32_1 = arith.constant 0 : i32
    return %c0_i32, %c0_i32_0 : i32, i32
  }
  func.func @transform_6(%arg0: i32) -> (i32, i32) {
    %c0_i32 = arith.constant 0 : i32
    %c0_i32_0 = arith.constant 0 : i32
    %c0_i32_1 = arith.constant 0 : i32
    return %c0_i32, %c0_i32_0 : i32, i32
  }
  func.func @transform_7(%arg0: i32) -> (i32, i32) {
    %c0_i32 = arith.constant 0 : i32
    %c0_i32_0 = arith.constant 0 : i32
    %c0_i32_1 = arith.constant 0 : i32
    return %c0_i32, %c0_i32_0 : i32, i32
  }
  func.func @transform_8(%arg0: i32) -> (i32, i32) {
    %c0_i32 = arith.constant 0 : i32
    %c0_i32_0 = arith.constant 0 : i32
    %c0_i32_1 = arith.constant 0 : i32
    return %c0_i32, %c0_i32_0 : i32, i32
  }
  func.func @transform_9(%arg0: i32) -> (i32, i32, i32) {
    %c0_i32 = arith.constant 0 : i32
    %c0_i32_0 = arith.constant 0 : i32
    %c0_i32_1 = arith.constant 0 : i32
    return %arg0, %c0_i32, %c0_i32_0 : i32, i32, i32
  }
}

</mosaic_0001>

<llo_original>
// kernel: tpu_custom_call.1
$region0: #{tpu_custom_call.1}
  #allocation0 [shape = 'u32[]', space=smem, size = 0x4, offset = 0x4, fixed_abs, tag = 'smem constant byte address 0x4 - core index']
  #allocation1 [shape = 'u32[144,128]{1,0:T(1,128)}', space=vmem, size = 0x12000, scoped, tag = 'internal scratch']
  #allocation2 [shape = 'f32[1,1]{1,0:T(1,128)S(6)}', space=smem, size = 0x200, scoped, tag = 'scoped memory for tpu_custom_call.1']
  %s0 = inlined_call_operand.hbm [shape: f32[8,16], index: 0, kind: input, shape index: {}]
  %s1 = inlined_call_operand.vmem [shape: f32[8,4], index: 1, kind: input, shape index: {}]
  %s2 = inlined_call_operand.vmem [shape: bf16[16,256], index: 2, kind: input, shape index: {}]
  %s3 = inlined_call_operand.vmem [shape: f32[4,256], index: 3, kind: input, shape index: {}]
  %s4 = inlined_call_operand.vmem [shape: f32[1,256], index: 4, kind: input, shape index: {}]
  %s5 = inlined_call_operand.hbm [shape: bf16[256,256], index: 5, kind: input, shape index: {}]
  %s6 = inlined_call_operand.vmem [shape: f32[1,256], index: 6, kind: input, shape index: {}]
  %s7 = inlined_call_operand.vmem [shape: bf16[1,256], index: 7, kind: input, shape index: {}]
  %s8 = inlined_call_operand.<no memory space> [shape: f32[1,1], index: 8, kind: input, shape index: {}]
  %s9 = inlined_call_operand.hbm [shape: f32[1,1,8], index: 9, kind: output, shape index: {}]
  %s10 = sld [smem:[#allocation0]]
  $region54: #{tpu_custom_call.1} parent=0
    _
  %s12 = ssub.s32 1, %s10
  %s13 = scalar_select 0, %s12, %s10
  %14 = sst [smem:[#allocation2]] %s8
  $region1: #{tpu_custom_call.1} parent=0
    #allocation3 [shape = 'u8[4096]{0}', space=vmem, size = 0x1000, scoped, tag = 'input window, operand 0, single buffered']
    #allocation4 [shape = 's32[1]{0}', space=sflag, size = 0x4, scoped, tag = 'scoped memory for tpu_custom_call.1']
    #allocation5 [shape = 's32[1]{0}', space=sflag, size = 0x4, scoped, tag = 'scoped memory for tpu_custom_call.1']
    #allocation6 [shape = 'u8[131072]{0}', space=vmem, size = 0x20000, scoped, tag = 'input window, operand 5, single buffered']
    #allocation7 [shape = 's32[1]{0}', space=sflag, size = 0x4, scoped, tag = 'scoped memory for tpu_custom_call.1']
    #allocation8 [shape = 'u8[512]{0}', space=vmem, size = 0x400, scoped, tag = 'output window, operand 0, single buffered']
    %15 = vsyncpa [#allocation4], 0
    %16 = vsyncpa [#allocation7], 0
    %17 = vsyncpa [#allocation5], 0
    // Predicated region
    $region2: #{tpu_custom_call.1} parent=1 // pred_check
      _
    $region3: #{tpu_custom_call.1} parent=1 // pred_check_branch
      %19 = sbr.rel (0) target = $region5
    $region4: #{tpu_custom_call.1} parent=1 // pred_region
      %s21 = ssub.s32 128, 128
      %22 = vsyncadd [#allocation4], %s21
      %s24 = sshll.u32 [#allocation3], 4
      %s25 = int_to_ptr.vmem [resolvable:$true] %s24
      %27 = dma.hbm_to_vmem [thread:$0]  %s0, 128, %s25, [#allocation4]
    $region5: #{tpu_custom_call.1} parent=1 // pred_fallthru
      _
    // Predicated region
    $region6: #{tpu_custom_call.1} parent=1 // pred_check
      _
    $region7: #{tpu_custom_call.1} parent=1 // pred_check_branch
      %29 = sbr.rel (0) target = $region9
    $region8: #{tpu_custom_call.1} parent=1 // pred_region
      _
    $region9: #{tpu_custom_call.1} parent=1 // pred_fallthru
      _
    // Predicated region
    $region10: #{tpu_custom_call.1} parent=1 // pred_check
      _
    $region11: #{tpu_custom_call.1} parent=1 // pred_check_branch
      %31 = sbr.rel (0) target = $region13
    $region12: #{tpu_custom_call.1} parent=1 // pred_region
      _
    $region13: #{tpu_custom_call.1} parent=1 // pred_fallthru
      _
    // Predicated region
    $region14: #{tpu_custom_call.1} parent=1 // pred_check
      _
    $region15: #{tpu_custom_call.1} parent=1 // pred_check_branch
      %33 = sbr.rel (0) target = $region17
    $region16: #{tpu_custom_call.1} parent=1 // pred_region
      _
    $region17: #{tpu_custom_call.1} parent=1 // pred_fallthru
      _
    // Predicated region
    $region18: #{tpu_custom_call.1} parent=1 // pred_check
      _
    $region19: #{tpu_custom_call.1} parent=1 // pred_check_branch
      %35 = sbr.rel (0) target = $region21
    $region20: #{tpu_custom_call.1} parent=1 // pred_region
      _
    $region21: #{tpu_custom_call.1} parent=1 // pred_fallthru
      _
    // Predicated region
    $region22: #{tpu_custom_call.1} parent=1 // pred_check
      _
    $region23: #{tpu_custom_call.1} parent=1 // pred_check_branch
      %37 = sbr.rel (0) target = $region25
    $region24: #{tpu_custom_call.1} parent=1 // pred_region
      %s39 = ssub.s32 4096, 4096
      %40 = vsyncadd [#allocation7], %s39
      %s41 = sshll.u32 [#allocation6], 4
      %s42 = int_to_ptr.vmem [resolvable:$true] %s41
      %47 = dma.hbm_to_vmem [thread:$0]  %s5, 4096, %s42, [#allocation7], 128, 128, 8
    $region25: #{tpu_custom_call.1} parent=1 // pred_fallthru
      _
    // Predicated region
    $region26: #{tpu_custom_call.1} parent=1 // pred_check
      _
    $region27: #{tpu_custom_call.1} parent=1 // pred_check_branch
      %49 = sbr.rel (0) target = $region29
    $region28: #{tpu_custom_call.1} parent=1 // pred_region
      _
    $region29: #{tpu_custom_call.1} parent=1 // pred_fallthru
      _
    // Predicated region
    $region30: #{tpu_custom_call.1} parent=1 // pred_check
      _
    $region31: #{tpu_custom_call.1} parent=1 // pred_check_branch
      %51 = sbr.rel (0) target = $region33
    $region32: #{tpu_custom_call.1} parent=1 // pred_region
      _
    $region33: #{tpu_custom_call.1} parent=1 // pred_fallthru
      _
    // Predicated region
    $region34: #{tpu_custom_call.1} parent=1 // pred_check
      _
    $region35: #{tpu_custom_call.1} parent=1 // pred_check_branch
      %53 = sbr.rel (0) target = $region37
    $region36: #{tpu_custom_call.1} parent=1 // pred_region
      _
    $region37: #{tpu_custom_call.1} parent=1 // pred_fallthru
      _
    // Predicated region
    $region38: #{tpu_custom_call.1} parent=1 // pred_check
      _
    $region39: #{tpu_custom_call.1} parent=1 // pred_check_branch
      %55 = sbr.rel (0) target = $region41
    $region40: #{tpu_custom_call.1} parent=1 // pred_region
      %56 = dma.done [#allocation4], 128
    $region41: #{tpu_custom_call.1} parent=1 // pred_fallthru
      _
    // Predicated region
    $region42: #{tpu_custom_call.1} parent=1 // pred_check
      _
    $region43: #{tpu_custom_call.1} parent=1 // pred_check_branch
      %58 = sbr.rel (0) target = $region45
    $region44: #{tpu_custom_call.1} parent=1 // pred_region
      %59 = dma.done [#allocation7], 4096
    $region45: #{tpu_custom_call.1} parent=1 // pred_fallthru
      _
    %v61 = vld [vmem:[#allocation3] sm:$0xff]
    %v62 = vpack.c.bf16 %v61, %v61
    %v63 = vld [vmem:[%s2] sm:$0xff]
    %v64 = vld [vmem:[%s2 + $0x8] sm:$0xff]
    %v65 = vld [vmem:[%s1] sm:$0xff]
    %v66 = vld [vmem:[%s3] sm:$0xff]
    %68 = vset.pattern.permute.xlu0 0
    %69 = vperm.xlu0 %68, %v65
    %v70 = vpop.permute.xlu0 %69
    %v73 = vlaneseq
    %v74 = vshrl.u32 %v73, 7
    %v75 = vsub.s32 0, %v74
    %v76 = vrot.slane %v66, %v75
    %v77 = vlaneseq
    %v78 = vshrl.u32 %v77, 7
    %v79 = vsub.s32 4, %v78
    %v80 = vrot.slane %v66, %v79
    %v83 = vlaneseq
    %v84 = vshrl.u32 %v83, 7
    %v85 = vsub.s32 0, %v84
    %v86 = vrot.slane %v76, %v85
    %v87 = vlaneseq
    %v88 = vshrl.u32 %v87, 7
    %v89 = vsub.s32 0, %v88
    %v90 = vrot.slane %v80, %v89
    %v91 = vmul.f32 %v70, %v86
    %v92 = vmul.f32 %v70, %v90
    %v95 = vunpack.c.l.b16 %v63
    %v96 = vunpack.c.h.b16 %v63
    %v97 = vunpack.c.l.b16 %v64
    %v98 = vunpack.c.h.b16 %v64
    %v99 = vpack.c.b16 %v97, %v95
    %v100 = vpack.c.b16 %v98, %v96
    %vm103 = vcmask 130048
    %v105 = vsel %vm103, %v62, 0
    %107 = vmatprep.subr.bf16.mxu0 %v100
    %108 = vmatpush1.bf16.msra.mxu0 %v99
    %109 = vmatprep.subr.bf16.mxu0 0
    %110 = vmatpush1.bf16.msra.mxu0 0
    %111 = vmatprep.subr.bf16.mxu0 0
    %112 = vmatpush1.bf16.msra.mxu0 0
    %113 = vmatprep.subr.bf16.mxu0 0
    %114 = vmatpush1.bf16.msra.mxu0 0
    %115 = vmatprep.subr.bf16.mxu0 0
    %116 = vmatpush1.bf16.msra.mxu0 0
    %117 = vmatprep.subr.bf16.mxu0 0
    %118 = vmatpush1.bf16.msra.mxu0 0
    %119 = vmatprep.subr.bf16.mxu0 0
    %120 = vmatpush1.bf16.msra.mxu0 0
    %121 = vmatprep.subr.bf16.mxu0 0
    %122 = vmatpush1.bf16.msra.mxu0 0
    %123 = vmatprep.subr.bf16.mxu0 0
    %124 = vmatpush1.bf16.msra.mxu0 0
    %125 = vmatprep.subr.bf16.mxu0 0
    %126 = vmatpush1.bf16.msra.mxu0 0
    %127 = vmatprep.subr.bf16.mxu0 0
    %128 = vmatpush1.bf16.msra.mxu0 0
    %129 = vmatprep.subr.bf16.mxu0 0
    %130 = vmatpush1.bf16.msra.mxu0 0
    %131 = vmatprep.subr.bf16.mxu0 0
    %132 = vmatpush1.bf16.msra.mxu0 0
    %133 = vmatprep.subr.bf16.mxu0 0
    %134 = vmatpush1.bf16.msra.mxu0 0
    %135 = vmatprep.subr.bf16.mxu0 0
    %136 = vmatpush1.bf16.msra.mxu0 0
    %137 = vmatprep.subr.bf16.mxu0 0
    %138 = vmatpush1.bf16.msra.mxu0 0
    %139 = vmatprep.mubr.bf16.mxu0 0
    %140 = vmatmul.mubr.bf16.gmra.mrb[0].mxu0 %v105
    %v141 = vpop.f32.mrb[0].mxu0
    %v142 = vadd.f32 %v91, %v141
    %v143 = vpop.f32.mrb[0].mxu0
    %v144 = vadd.f32 %v92, %v143
    %v145 = vpop.f32.mrb[0].mxu0
    %v146 = vpop.f32.mrb[0].mxu0
    %147 = vdwg.mxu0
    %148 = vset.pattern.permute.xlu0 1
    %149 = vperm.xlu0 %148, %v65
    %v150 = vpop.permute.xlu0 %149
    %v152 = vlaneseq
    %v153 = vshrl.u32 %v152, 7
    %v154 = vsub.s32 1, %v153
    %v155 = vrot.slane %v66, %v154
    %v156 = vlaneseq
    %v157 = vshrl.u32 %v156, 7
    %v158 = vsub.s32 5, %v157
    %v159 = vrot.slane %v66, %v158
    %v162 = vlaneseq
    %v163 = vshrl.u32 %v162, 7
    %v164 = vsub.s32 1, %v163
    %v165 = vrot.slane %v155, %v164
    %v166 = vlaneseq
    %v167 = vshrl.u32 %v166, 7
    %v168 = vsub.s32 1, %v167
    %v169 = vrot.slane %v159, %v168
    %v170 = vmul.f32 %v150, %v165
    %v171 = vmul.f32 %v150, %v169
    %v172 = vadd.f32 %v142, %v170
    %v173 = vadd.f32 %v144, %v171
    %174 = vset.pattern.permute.xlu0 2
    %175 = vperm.xlu0 %174, %v65
    %v176 = vpop.permute.xlu0 %175
    %v178 = vlaneseq
    %v179 = vshrl.u32 %v178, 7
    %v180 = vsub.s32 2, %v179
    %v181 = vrot.slane %v66, %v180
    %v182 = vlaneseq
    %v183 = vshrl.u32 %v182, 7
    %v184 = vsub.s32 6, %v183
    %v185 = vrot.slane %v66, %v184
    %v188 = vlaneseq
    %v189 = vshrl.u32 %v188, 7
    %v190 = vsub.s32 2, %v189
    %v191 = vrot.slane %v181, %v190
    %v192 = vlaneseq
    %v193 = vshrl.u32 %v192, 7
    %v194 = vsub.s32 2, %v193
    %v195 = vrot.slane %v185, %v194
    %v196 = vmul.f32 %v176, %v191
    %v197 = vmul.f32 %v176, %v195
    %v198 = vadd.f32 %v172, %v196
    %v199 = vadd.f32 %v173, %v197
    %200 = vset.pattern.permute.xlu0 3
    %201 = vperm.xlu0 %200, %v65
    %v202 = vpop.permute.xlu0 %201
    %v204 = vlaneseq
    %v205 = vshrl.u32 %v204, 7
    %v206 = vsub.s32 3, %v205
    %v207 = vrot.slane %v66, %v206
    %v208 = vlaneseq
    %v209 = vshrl.u32 %v208, 7
    %v210 = vsub.s32 7, %v209
    %v211 = vrot.slane %v66, %v210
    %v214 = vlaneseq
    %v215 = vshrl.u32 %v214, 7
    %v216 = vsub.s32 3, %v215
    %v217 = vrot.slane %v207, %v216
    %v218 = vlaneseq
    %v219 = vshrl.u32 %v218, 7
    %v220 = vsub.s32 3, %v219
    %v221 = vrot.slane %v211, %v220
    %v222 = vmul.f32 %v202, %v217
    %v223 = vmul.f32 %v202, %v221
    %v224 = vadd.f32 %v198, %v222
    %v225 = vadd.f32 %v199, %v223
    %v226 = vld [vmem:[%s4] sm:$0x3]
    %v228 = vlaneseq
    %v229 = vshrl.u32 %v228, 7
    %v230 = vsub.s32 0, %v229
    %v231 = vrot.slane %v226, %v230
    %v232 = vlaneseq
    %v233 = vshrl.u32 %v232, 7
    %v234 = vsub.s32 1, %v233
    %v235 = vrot.slane %v226, %v234
    %v238 = vadd.f32 %v224, %v231
    %v239 = vadd.f32 %v225, %v235
    %v240 = vmax.f32 %v238, 0.0
    %v241 = vmax.f32 %v239, 0.0
    %v242 = vpack.c.bf16 %v240, %v240
    %v243 = vpack.c.bf16 %v241, %v241
    %v244 = vld [vmem:[#allocation6] sm:$0xff]
    %v245 = vld [vmem:[#allocation6 + $0x8] sm:$0xff]
    %v246 = vld [vmem:[#allocation6 + $0x10] sm:$0xff]
    %v247 = vld [vmem:[#allocation6 + $0x18] sm:$0xff]
    %v248 = vld [vmem:[#allocation6 + $0x20] sm:$0xff]
    %v249 = vld [vmem:[#allocation6 + $0x28] sm:$0xff]
    %v250 = vld [vmem:[#allocation6 + $0x30] sm:$0xff]
    %v251 = vld [vmem:[#allocation6 + $0x38] sm:$0xff]
    %v252 = vld [vmem:[#allocation6 + $0x40] sm:$0xff]
    %v253 = vld [vmem:[#allocation6 + $0x48] sm:$0xff]
    %v254 = vld [vmem:[#allocation6 + $0x50] sm:$0xff]
    %v255 = vld [vmem:[#allocation6 + $0x58] sm:$0xff]
    %v256 = vld [vmem:[#allocation6 + $0x60] sm:$0xff]
    %v257 = vld [vmem:[#allocation6 + $0x68] sm:$0xff]
    %v258 = vld [vmem:[#allocation6 + $0x70] sm:$0xff]
    %v259 = vld [vmem:[#allocation6 + $0x78] sm:$0xff]
    %v260 = vld [vmem:[#allocation6 + $0x80] sm:$0xff]
    %v261 = vld [vmem:[#allocation6 + $0x88] sm:$0xff]
    %v262 = vld [vmem:[#allocation6 + $0x90] sm:$0xff]
    %v263 = vld [vmem:[#allocation6 + $0x98] sm:$0xff]
    %v264 = vld [vmem:[#allocation6 + $0xa0] sm:$0xff]
    %v265 = vld [vmem:[#allocation6 + $0xa8] sm:$0xff]
    %v266 = vld [vmem:[#allocation6 + $0xb0] sm:$0xff]
    %v267 = vld [vmem:[#allocation6 + $0xb8] sm:$0xff]
    %v268 = vld [vmem:[#allocation6 + $0xc0] sm:$0xff]
    %v269 = vld [vmem:[#allocation6 + $0xc8] sm:$0xff]
    %v270 = vld [vmem:[#allocation6 + $0xd0] sm:$0xff]
    %v271 = vld [vmem:[#allocation6 + $0xd8] sm:$0xff]
    %v272 = vld [vmem:[#allocation6 + $0xe0] sm:$0xff]
    %v273 = vld [vmem:[#allocation6 + $0xe8] sm:$0xff]
    %v274 = vld [vmem:[#allocation6 + $0xf0] sm:$0xff]
    %v275 = vld [vmem:[#allocation6 + $0xf8] sm:$0xff]
    %v276 = vld [vmem:[%s6] sm:$0x3]
    %v278 = vlaneseq
    %v279 = vshrl.u32 %v278, 7
    %v280 = vsub.s32 0, %v279
    %v281 = vrot.slane %v276, %v280
    %v282 = vlaneseq
    %v283 = vshrl.u32 %v282, 7
    %v284 = vsub.s32 1, %v283
    %v285 = vrot.slane %v276, %v284
    %v320 = vunpack.c.l.b16 %v244
    %v321 = vunpack.c.h.b16 %v244
    %v322 = vunpack.c.l.b16 %v245
    %v323 = vunpack.c.h.b16 %v245
    %v324 = vunpack.c.l.b16 %v246
    %v325 = vunpack.c.h.b16 %v246
    %v326 = vunpack.c.l.b16 %v247
    %v327 = vunpack.c.h.b16 %v247
    %v328 = vunpack.c.l.b16 %v248
    %v329 = vunpack.c.h.b16 %v248
    %v330 = vunpack.c.l.b16 %v249
    %v331 = vunpack.c.h.b16 %v249
    %v332 = vunpack.c.l.b16 %v250
    %v333 = vunpack.c.h.b16 %v250
    %v334 = vunpack.c.l.b16 %v251
    %v335 = vunpack.c.h.b16 %v251
    %v336 = vunpack.c.l.b16 %v252
    %v337 = vunpack.c.h.b16 %v252
    %v338 = vunpack.c.l.b16 %v253
    %v339 = vunpack.c.h.b16 %v253
    %v340 = vunpack.c.l.b16 %v254
    %v341 = vunpack.c.h.b16 %v254
    %v342 = vunpack.c.l.b16 %v255
    %v343 = vunpack.c.h.b16 %v255
    %v344 = vunpack.c.l.b16 %v256
    %v345 = vunpack.c.h.b16 %v256
    %v346 = vunpack.c.l.b16 %v257
    %v347 = vunpack.c.h.b16 %v257
    %v348 = vunpack.c.l.b16 %v258
    %v349 = vunpack.c.h.b16 %v258
    %v350 = vunpack.c.l.b16 %v259
    %v351 = vunpack.c.h.b16 %v259
    %v352 = vunpack.c.l.b16 %v260
    %v353 = vunpack.c.h.b16 %v260
    %v354 = vunpack.c.l.b16 %v261
    %v355 = vunpack.c.h.b16 %v261
    %v356 = vunpack.c.l.b16 %v262
    %v357 = vunpack.c.h.b16 %v262
    %v358 = vunpack.c.l.b16 %v263
    %v359 = vunpack.c.h.b16 %v263
    %v360 = vunpack.c.l.b16 %v264
    %v361 = vunpack.c.h.b16 %v264
    %v362 = vunpack.c.l.b16 %v265
    %v363 = vunpack.c.h.b16 %v265
    %v364 = vunpack.c.l.b16 %v266
    %v365 = vunpack.c.h.b16 %v266
    %v366 = vunpack.c.l.b16 %v267
    %v367 = vunpack.c.h.b16 %v267
    %v368 = vunpack.c.l.b16 %v268
    %v369 = vunpack.c.h.b16 %v268
    %v370 = vunpack.c.l.b16 %v269
    %v371 = vunpack.c.h.b16 %v269
    %v372 = vunpack.c.l.b16 %v270
    %v373 = vunpack.c.h.b16 %v270
    %v374 = vunpack.c.l.b16 %v271
    %v375 = vunpack.c.h.b16 %v271
    %v376 = vunpack.c.l.b16 %v272
    %v377 = vunpack.c.h.b16 %v272
    %v378 = vunpack.c.l.b16 %v273
    %v379 = vunpack.c.h.b16 %v273
    %v380 = vunpack.c.l.b16 %v274
    %v381 = vunpack.c.h.b16 %v274
    %v382 = vunpack.c.l.b16 %v275
    %v383 = vunpack.c.h.b16 %v275
    %v384 = vpack.c.b16 %v322, %v320
    %v385 = vpack.c.b16 %v323, %v321
    %v386 = vpack.c.b16 %v326, %v324
    %v387 = vpack.c.b16 %v327, %v325
    %v388 = vpack.c.b16 %v330, %v328
    %v389 = vpack.c.b16 %v331, %v329
    %v390 = vpack.c.b16 %v334, %v332
    %v391 = vpack.c.b16 %v335, %v333
    %v392 = vpack.c.b16 %v338, %v336
    %v393 = vpack.c.b16 %v339, %v337
    %v394 = vpack.c.b16 %v342, %v340
    %v395 = vpack.c.b16 %v343, %v341
    %v396 = vpack.c.b16 %v346, %v344
    %v397 = vpack.c.b16 %v347, %v345
    %v398 = vpack.c.b16 %v350, %v348
    %v399 = vpack.c.b16 %v351, %v349
    %v400 = vpack.c.b16 %v354, %v352
    %v401 = vpack.c.b16 %v355, %v353
    %v402 = vpack.c.b16 %v358, %v356
    %v403 = vpack.c.b16 %v359, %v357
    %v404 = vpack.c.b16 %v362, %v360
    %v405 = vpack.c.b16 %v363, %v361
    %v406 = vpack.c.b16 %v366, %v364
    %v407 = vpack.c.b16 %v367, %v365
    %v408 = vpack.c.b16 %v370, %v368
    %v409 = vpack.c.b16 %v371, %v369
    %v410 = vpack.c.b16 %v374, %v372
    %v411 = vpack.c.b16 %v375, %v373
    %v412 = vpack.c.b16 %v378, %v376
    %v413 = vpack.c.b16 %v379, %v377
    %v414 = vpack.c.b16 %v382, %v380
    %v415 = vpack.c.b16 %v383, %v381
    %448 = vmatprep.subr.bf16.mxu0 %v385
    %449 = vmatpush1.bf16.msra.mxu0 %v384
    %450 = vmatprep.subr.bf16.mxu0 %v387
    %451 = vmatpush1.bf16.msra.mxu0 %v386
    %452 = vmatprep.subr.bf16.mxu0 %v389
    %453 = vmatpush1.bf16.msra.mxu0 %v388
    %454 = vmatprep.subr.bf16.mxu0 %v391
    %455 = vmatpush1.bf16.msra.mxu0 %v390
    %456 = vmatprep.subr.bf16.mxu0 %v393
    %457 = vmatpush1.bf16.msra.mxu0 %v392
    %458 = vmatprep.subr.bf16.mxu0 %v395
    %459 = vmatpush1.bf16.msra.mxu0 %v394
    %460 = vmatprep.subr.bf16.mxu0 %v397
    %461 = vmatpush1.bf16.msra.mxu0 %v396
    %462 = vmatprep.subr.bf16.mxu0 %v399
    %463 = vmatpush1.bf16.msra.mxu0 %v398
    %464 = vmatprep.subr.bf16.mxu0 %v401
    %465 = vmatpush1.bf16.msra.mxu0 %v400
    %466 = vmatprep.subr.bf16.mxu0 %v403
    %467 = vmatpush1.bf16.msra.mxu0 %v402
    %468 = vmatprep.subr.bf16.mxu0 %v405
    %469 = vmatpush1.bf16.msra.mxu0 %v404
    %470 = vmatprep.subr.bf16.mxu0 %v407
    %471 = vmatpush1.bf16.msra.mxu0 %v406
    %472 = vmatprep.subr.bf16.mxu0 %v409
    %473 = vmatpush1.bf16.msra.mxu0 %v408
    %474 = vmatprep.subr.bf16.mxu0 %v411
    %475 = vmatpush1.bf16.msra.mxu0 %v410
    %476 = vmatprep.subr.bf16.mxu0 %v413
    %477 = vmatpush1.bf16.msra.mxu0 %v412
    %478 = vmatprep.subr.bf16.mxu0 %v415
    %479 = vmatpush1.bf16.msra.mxu0 %v414
    %480 = vmatprep.mubr.bf16.mxu0 %v243
    %481 = vmatmul.mubr.bf16.gmra.mrb[0].mxu0 %v242
    %v482 = vpop.f32.mrb[0].mxu0
    %v483 = vadd.f32 %v281, %v482
    %v484 = vpop.f32.mrb[0].mxu0
    %v485 = vadd.f32 %v285, %v484
    %v486 = vpop.f32.mrb[0].mxu0
    %v487 = vpop.f32.mrb[0].mxu0
    %488 = vdwg.mxu0
    %v489 = vmax.f32 %v483, 0.0
    %v490 = vmax.f32 %v485, 0.0
    %v491 = vld [vmem:[%s7] sm:$0x3]
    %v492 = vpack.c.bf16 %v489, %v489
    %v493 = vpack.c.bf16 %v490, %v490
    %s494 = sld [smem:[#allocation2]]
    %v495 = vstv %s494
    %v498 = vunpack.c.l.s4 1966171168
    %v499 = vunpack.c.0.s8 %v498
    %v500 = vlaneseq
    %v501 = vshrl.u32 %v500, 7
    %v502 = vsub.s32 %v499, %v501
    %v503 = vrot.slane %v491, %v502
    %v504 = vcombine.high %v503, %v503
    %v506 = vunpack.c.l.s4 1966171168
    %v507 = vunpack.c.0.s8 %v506
    %v508 = vlaneseq
    %v509 = vshrl.u32 %v508, 7
    %v510 = vsub.s32 %v507, %v509
    %v511 = vrot.slane %v503, %v510
    %v513 = vunpack.c.l.s4 1966171168
    %v514 = vunpack.c.0.s8 %v513
    %v515 = vlaneseq
    %v516 = vshrl.u32 %v515, 7
    %v517 = vsub.s32 %v514, %v516
    %v518 = vrot.slane %v504, %v517
    %521 = vmatprep.subr.bf16.mxu0 %v493
    %522 = vmatpush1.bf16.xpose.msra.mxu0 %v492
    %523 = vmatprep.subr.bf16.mxu0 0
    %524 = vmatpush1.bf16.xpose.msra.mxu0 0
    %525 = vmatprep.subr.bf16.mxu0 0
    %526 = vmatpush1.bf16.xpose.msra.mxu0 0
    %527 = vmatprep.subr.bf16.mxu0 0
    %528 = vmatpush1.bf16.xpose.msra.mxu0 0
    %529 = vmatprep.subr.bf16.mxu0 0
    %530 = vmatpush1.bf16.xpose.msra.mxu0 0
    %531 = vmatprep.subr.bf16.mxu0 0
    %532 = vmatpush1.bf16.xpose.msra.mxu0 0
    %533 = vmatprep.subr.bf16.mxu0 0
    %534 = vmatpush1.bf16.xpose.msra.mxu0 0
    %535 = vmatprep.subr.bf16.mxu0 0
    %536 = vmatpush1.bf16.xpose.msra.mxu0 0
    %537 = vmatprep.subr.bf16.mxu0 0
    %538 = vmatpush1.bf16.xpose.msra.mxu0 0
    %539 = vmatprep.subr.bf16.mxu0 0
    %540 = vmatpush1.bf16.xpose.msra.mxu0 0
    %541 = vmatprep.subr.bf16.mxu0 0
    %542 = vmatpush1.bf16.xpose.msra.mxu0 0
    %543 = vmatprep.subr.bf16.mxu0 0
    %544 = vmatpush1.bf16.xpose.msra.mxu0 0
    %545 = vmatprep.subr.bf16.mxu0 0
    %546 = vmatpush1.bf16.xpose.msra.mxu0 0
    %547 = vmatprep.subr.bf16.mxu0 0
    %548 = vmatpush1.bf16.xpose.msra.mxu0 0
    %549 = vmatprep.subr.bf16.mxu0 0
    %550 = vmatpush1.bf16.xpose.msra.mxu0 0
    %551 = vmatprep.subr.bf16.mxu0 0
    %552 = vmatpush1.bf16.xpose.msra.mxu0 0
    %553 = vmatprep.mubr.bf16.mxu0 %v518
    %554 = vmatmul.mubr.bf16.gmra.mrb[0].mxu0 %v511
    %v555 = vpop.f32.mrb[0].mxu0
    %v556 = vadd.f32 %v495, %v555
    %v557 = vpop.f32.mrb[0].mxu0
    %v558 = vpop.f32.mrb[0].mxu0
    %v559 = vpop.f32.mrb[0].mxu0
    %560 = vdwg.mxu0
    %vm561 = vcmask 57344
    %562 = vst.msk [vmem:[#allocation8] sm:$0x1] %vm561, %v556
    // Predicated region
    $region46: #{tpu_custom_call.1} parent=1 // pred_check
      _
    $region47: #{tpu_custom_call.1} parent=1 // pred_check_branch
      %564 = sbr.rel (0) target = $region49
    $region48: #{tpu_custom_call.1} parent=1 // pred_region
      %s566 = ssub.s32 16, 16
      %567 = vsyncadd [#allocation5], %s566
      %s569 = sshll.u32 [#allocation8], 4
      %s570 = int_to_ptr.vmem [resolvable:$true] %s569
      %572 = dma.vmem_to_hbm [thread:$0]  %s570, 16, %s9, [#allocation5]
    $region49: #{tpu_custom_call.1} parent=1 // pred_fallthru
      _
    // Predicated region
    $region50: #{tpu_custom_call.1} parent=1 // pred_check
      _
    $region51: #{tpu_custom_call.1} parent=1 // pred_check_branch
      %574 = sbr.rel (0) target = $region53
    $region52: #{tpu_custom_call.1} parent=1 // pred_region
      %575 = dma.done [#allocation5], 16
    $region53: #{tpu_custom_call.1} parent=1 // pred_fallthru
      _
    %576 = vsyncpa [#allocation4], 1
    %577 = vsyncpa [#allocation7], 1
    %578 = vsyncpa [#allocation5], 1

</llo_original>
